<compile_context>
chip_gen: v7x
topology: tpu7x:2x2x1
jax: 0.10.0
libtpu: 0.0.40
codegen_flags: <defaults>
</compile_context>

<pallas_src>
import functools

import jax
import jax.numpy as jnp
from jax.experimental import pallas as pl
from jax.experimental.pallas import tpu as pltpu


def _round_up(x: int, m: int) -> int:
    return ((x + m - 1) // m) * m


def classifier_kernel(x_ref, w1_ref, b1_ref, w2_ref, b2_ref, o_ref, *, num_classes):
    # fc: x @ W1 (bf16 MXU, f32 accumulate) + b1 (f32)
    h = jnp.dot(x_ref[...], w1_ref[...], preferred_element_type=jnp.float32)
    h = h + b1_ref[...]

    # hl: h @ W2 (cast activation back to bf16 for the MXU, f32 accumulate) + b2 (f32)
    logits = jnp.dot(h.astype(w2_ref.dtype), w2_ref[...],
                     preferred_element_type=jnp.float32)
    logits = logits + b2_ref[...]

    # do: dropout (eval mode) == identity
    # ru: ReLU (f32 epilogue)
    a = jnp.maximum(logits, 0.0)

    # Mask padded class lanes (class axis padded to a multiple of 128 for
    # lane-dense stores) so they do not contribute to the softmax.
    lane = jax.lax.broadcasted_iota(jnp.int32, a.shape, 1)
    a = jnp.where(lane < num_classes, a, -jnp.inf)

    # sm: numerically-stable LogSoftmax over dim=1 (class axis), f32.
    m = jnp.max(a, axis=1, keepdims=True)
    s = a - m
    lse = jnp.log(jnp.sum(jnp.exp(s), axis=1, keepdims=True))
    o_ref[...] = (s - lse).astype(o_ref.dtype)


def classifier_forward(x, w1, b1, w2, b2, *, block_b=128):
    """x: [B, input_size]; w1: [hidden, input]; b1: [hidden];
       w2: [classes, hidden]; b2: [classes]  (PyTorch nn.Linear conventions)."""
    x = jnp.asarray(x, jnp.float32)
    B, IN = x.shape
    H = w1.shape[0]
    C = w2.shape[0]

    # Tile sizes: lane-dense class axis, MXU-filling batch tile (clamped for toy B).
    C_pad = _round_up(C, 128)
    TB = min(block_b, _round_up(B, 8))
    B_pad = _round_up(B, TB)
    grid = (pl.cdiv(B_pad, TB),)

    # Layout plumbing (wrapper-side only): pre-transpose weights, pad class axis,
    # cast matmul operands to bf16; biases stay f32.
    w1t = jnp.asarray(w1, jnp.float32).T.astype(jnp.bfloat16)            # [IN, H]
    w2t = jnp.asarray(w2, jnp.float32).T                                 # [H, C]
    w2t = jnp.pad(w2t, ((0, 0), (0, C_pad - C))).astype(jnp.bfloat16)    # [H, C_pad]
    b1r = jnp.asarray(b1, jnp.float32).reshape(1, H)                     # [1, H]
    b2r = jnp.pad(jnp.asarray(b2, jnp.float32).reshape(1, C),
                  ((0, 0), (0, C_pad - C)))                              # [1, C_pad]
    x_p = jnp.pad(x, ((0, B_pad - B), (0, 0))).astype(jnp.bfloat16)      # [B_pad, IN]

    cost = pl.CostEstimate(
        flops=2 * B_pad * (IN * H + H * C_pad),
        transcendentals=B_pad * C_pad + B_pad,          # exp + log
        bytes_accessed=(x_p.size * 2 + w1t.size * 2 + w2t.size * 2
                        + b1r.size * 4 + b2r.size * 4 + B_pad * C_pad * 4),
    )

    out = pl.pallas_call(
        functools.partial(classifier_kernel, num_classes=C),
        out_shape=jax.ShapeDtypeStruct((B_pad, C_pad), jnp.float32),
        grid=grid,
        in_specs=[
            pl.BlockSpec((TB, IN), lambda i: (i, 0)),      # x: batch-tiled
            pl.BlockSpec((IN, H), lambda i: (0, 0)),       # W1^T: resident
            pl.BlockSpec((1, H), lambda i: (0, 0)),        # b1: resident
            pl.BlockSpec((H, C_pad), lambda i: (0, 0)),    # W2^T: resident
            pl.BlockSpec((1, C_pad), lambda i: (0, 0)),    # b2: resident
        ],
        out_specs=pl.BlockSpec((TB, C_pad), lambda i: (i, 0)),
        compiler_params=pltpu.CompilerParams(
            dimension_semantics=("parallel",),             # megacore on v7x
            vmem_limit_bytes=32 * 1024 * 1024,
        ),
        cost_estimate=cost,
    )(x_p, w1t, b1r, w2t, b2r)

    return out[:B, :C]


def _torch_like_linear_init(key, out_features, in_features):
    # Matches torch.nn.Linear default: U(-1/sqrt(fan_in), 1/sqrt(fan_in))
    kw, kb = jax.random.split(key)
    bound = 1.0 / jnp.sqrt(jnp.float32(in_features))
    w = jax.random.uniform(kw, (out_features, in_features), jnp.float32, -bound, bound)
    b = jax.random.uniform(kb, (out_features,), jnp.float32, -bound, bound)
    return w, b


if __name__ == "__main__":
    # Small shapes consistent with the module's forward.
    B, INPUT_SIZE, HIDDEN_SIZE, NUM_CLASSES = 8, 32, 64, 16

    key = jax.random.PRNGKey(0)
    kx, k1, k2 = jax.random.split(key, 3)

    x = jax.random.normal(kx, (B, INPUT_SIZE), jnp.float32)
    w1, b1 = _torch_like_linear_init(k1, HIDDEN_SIZE, INPUT_SIZE)   # fc
    w2, b2 = _torch_like_linear_init(k2, NUM_CLASSES, HIDDEN_SIZE)  # hl

    out = classifier_forward(x, w1, b1, w2, b2)
    out = jax.block_until_ready(out)
    assert out.shape == (B, NUM_CLASSES)

    # Reference 1: same bf16-matmul / f32-accumulate recipe in plain JAX (tight check).
    xb = x.astype(jnp.bfloat16)
    w1b = w1.T.astype(jnp.bfloat16)
    w2b = w2.T.astype(jnp.bfloat16)
    h_ref = jnp.dot(xb, w1b, preferred_element_type=jnp.float32) + b1
    logits_ref = jnp.dot(h_ref.astype(jnp.bfloat16), w2b,
                         preferred_element_type=jnp.float32) + b2
    a_ref = jnp.maximum(logits_ref, 0.0)
    ref_bf16 = jax.nn.log_softmax(a_ref, axis=1)
    assert jnp.allclose(out, ref_bf16, atol=2e-3, rtol=2e-3), "mismatch vs bf16 JAX reference"

    # Reference 2: full-f32 reference (loose check, guards gross semantic errors).
    h_f32 = x @ w1.T + b1
    logits_f32 = h_f32 @ w2.T + b2
    ref_f32 = jax.nn.log_softmax(jnp.maximum(logits_f32, 0.0), axis=1)
    assert jnp.allclose(out, ref_f32, atol=5e-2, rtol=5e-2), "mismatch vs f32 JAX reference"

    print("KERNEL_OK")
</pallas_src>

<mosaic_0001>
module attributes {stable_mosaic.version = 11 : i64} {
  func.func @classifier_kernel(%arg0: i32, %arg1: memref<8x32xbf16, #tpu.memory_space<vmem>>, %arg2: memref<32x64xbf16, #tpu.memory_space<vmem>>, %arg3: memref<1x64xf32, #tpu.memory_space<vmem>>, %arg4: memref<64x128xbf16, #tpu.memory_space<vmem>>, %arg5: memref<1x128xf32, #tpu.memory_space<vmem>>, %arg6: memref<8x128xf32, #tpu.memory_space<vmem>>) attributes {dimension_semantics = [#tpu.dimension_semantics<parallel>], iteration_bounds = array<i64: 1>, scalar_prefetch = 0 : i64, scratch_operands = 0 : i64, tpu.core_type = #tpu.core_type<tc>, window_params = [{transform_indices = @transform_0, window_bounds = array<i64: 8, 32>}, {pipeline_mode = #tpu.pipeline_mode<synchronous>, transform_indices = @transform_1, window_bounds = array<i64: 32, 64>}, {pipeline_mode = #tpu.pipeline_mode<synchronous>, transform_indices = @transform_2, window_bounds = array<i64: 1, 64>}, {pipeline_mode = #tpu.pipeline_mode<synchronous>, transform_indices = @transform_3, window_bounds = array<i64: 64, 128>}, {pipeline_mode = #tpu.pipeline_mode<synchronous>, transform_indices = @transform_4, window_bounds = array<i64: 1, 128>}, {transform_indices = @transform_5, window_bounds = array<i64: 8, 128>}]} {
    %c0 = arith.constant 0 : index
    %c0_0 = arith.constant 0 : index
    %0 = vector.load %arg1[%c0, %c0_0] : memref<8x32xbf16, #tpu.memory_space<vmem>>, vector<8x32xbf16>
    %c0_1 = arith.constant 0 : index
    %c0_2 = arith.constant 0 : index
    %1 = vector.load %arg2[%c0_1, %c0_2] : memref<32x64xbf16, #tpu.memory_space<vmem>>, vector<32x64xbf16>
    %cst = arith.constant dense<0.000000e+00> : vector<8x64xf32>
    %2 = tpu.matmul %0, %1, %cst {dimension_numbers = #tpu.dot_dimension_numbers<[1], [0], [0], [1], [0, 0, 1, 1], [], []>} : vector<8x32xbf16>, vector<32x64xbf16>, vector<8x64xf32> -> vector<8x64xf32>
    %c0_3 = arith.constant 0 : index
    %c0_4 = arith.constant 0 : index
    %3 = vector.load %arg3[%c0_3, %c0_4] : memref<1x64xf32, #tpu.memory_space<vmem>>, vector<1x64xf32>
    %4 = vector.broadcast %3 : vector<1x64xf32> to vector<8x64xf32>
    %5 = arith.addf %2, %4 : vector<8x64xf32>
    %6 = arith.truncf %5 : vector<8x64xf32> to vector<8x64xbf16>
    %c0_5 = arith.constant 0 : index
    %c0_6 = arith.constant 0 : index
    %7 = vector.load %arg4[%c0_5, %c0_6] : memref<64x128xbf16, #tpu.memory_space<vmem>>, vector<64x128xbf16>
    %cst_7 = arith.constant dense<0.000000e+00> : vector<8x128xf32>
    %8 = tpu.matmul %6, %7, %cst_7 {dimension_numbers = #tpu.dot_dimension_numbers<[1], [0], [0], [1], [0, 0, 1, 1], [], []>} : vector<8x64xbf16>, vector<64x128xbf16>, vector<8x128xf32> -> vector<8x128xf32>
    %c0_8 = arith.constant 0 : index
    %c0_9 = arith.constant 0 : index
    %9 = vector.load %arg5[%c0_8, %c0_9] : memref<1x128xf32, #tpu.memory_space<vmem>>, vector<1x128xf32>
    %10 = vector.broadcast %9 : vector<1x128xf32> to vector<8x128xf32>
    %11 = arith.addf %8, %10 : vector<8x128xf32>
    %cst_10 = arith.constant 0.000000e+00 : f32
    %12 = vector.broadcast %cst_10 : f32 to vector<8x128xf32>
    %13 = arith.maximumf %11, %12 : vector<8x128xf32>
    %14 = tpu.iota {dimensions = array<i32: 1>} : vector<8x128xi32>
    %c16_i32 = arith.constant 16 : i32
    %15 = vector.broadcast %c16_i32 : i32 to vector<8x128xi32>
    %16 = arith.cmpi slt, %14, %15 : vector<8x128xi32>
    %cst_11 = arith.constant 0xFF800000 : f32
    %17 = vector.broadcast %cst_11 : f32 to vector<8x128xf32>
    %18 = arith.select %16, %13, %17 : vector<8x128xi1>, vector<8x128xf32>
    %cst_12 = arith.constant dense<0xFF800000> : vector<8xf32>
    %19 = vector.multi_reduction <maximumf>, %18, %cst_12 [1] : vector<8x128xf32> to vector<8xf32>
    %20 = vector.shape_cast %19 : vector<8xf32> to vector<8x1xf32>
    %21 = vector.broadcast %20 : vector<8x1xf32> to vector<8x128xf32>
    %22 = arith.subf %18, %21 : vector<8x128xf32>
    %23 = math.exp %22 : vector<8x128xf32>
    %cst_13 = arith.constant dense<0.000000e+00> : vector<8xf32>
    %24 = vector.multi_reduction <add>, %23, %cst_13 [1] : vector<8x128xf32> to vector<8xf32>
    %25 = vector.shape_cast %24 : vector<8xf32> to vector<8x1xf32>
    %26 = math.log %25 : vector<8x1xf32>
    %27 = vector.broadcast %26 : vector<8x1xf32> to vector<8x128xf32>
    %28 = arith.subf %22, %27 : vector<8x128xf32>
    %c0_14 = arith.constant 0 : index
    %c0_15 = arith.constant 0 : index
    %29 = vector.load %arg6[%c0_14, %c0_15] : memref<8x128xf32, #tpu.memory_space<vmem>>, vector<8x128xf32>
    tpu.vector_store %arg6[%c0_14, %c0_15], %28 {strides = array<i32>} : memref<8x128xf32, #tpu.memory_space<vmem>>, vector<8x128xf32>,
    return
  }
  func.func @transform_0(%arg0: i32) -> (i32, i32) {
    %c0_i32 = arith.constant 0 : i32
    %c0_i32_0 = arith.constant 0 : i32
    return %arg0, %c0_i32 : i32, i32
  }
  func.func @transform_1(%arg0: i32) -> (i32, i32) {
    %c0_i32 = arith.constant 0 : i32
    %c0_i32_0 = arith.constant 0 : i32
    %c0_i32_1 = arith.constant 0 : i32
    return %c0_i32, %c0_i32_0 : i32, i32
  }
  func.func @transform_2(%arg0: i32) -> (i32, i32) {
    %c0_i32 = arith.constant 0 : i32
    %c0_i32_0 = arith.constant 0 : i32
    %c0_i32_1 = arith.constant 0 : i32
    return %c0_i32, %c0_i32_0 : i32, i32
  }
  func.func @transform_3(%arg0: i32) -> (i32, i32) {
    %c0_i32 = arith.constant 0 : i32
    %c0_i32_0 = arith.constant 0 : i32
    %c0_i32_1 = arith.constant 0 : i32
    return %c0_i32, %c0_i32_0 : i32, i32
  }
  func.func @transform_4(%arg0: i32) -> (i32, i32) {
    %c0_i32 = arith.constant 0 : i32
    %c0_i32_0 = arith.constant 0 : i32
    %c0_i32_1 = arith.constant 0 : i32
    return %c0_i32, %c0_i32_0 : i32, i32
  }
  func.func @transform_5(%arg0: i32) -> (i32, i32) {
    %c0_i32 = arith.constant 0 : i32
    %c0_i32_0 = arith.constant 0 : i32
    return %arg0, %c0_i32 : i32, i32
  }
}

</mosaic_0001>

<llo_original>
// kernel: tpu_custom_call.1
$region0: #{tpu_custom_call.1}
  #allocation0 [shape = 'u32[]', space=smem, size = 0x4, offset = 0x4, fixed_abs, tag = 'smem constant byte address 0x4 - core index']
  #allocation1 [shape = 'u32[144,128]{1,0:T(1,128)}', space=vmem, size = 0x12000, scoped, tag = 'internal scratch']
  %s0 = inlined_call_operand.hbm [shape: bf16[8,32], index: 0, kind: input, shape index: {}]
  %s1 = inlined_call_operand.hbm [shape: bf16[32,64], index: 1, kind: input, shape index: {}]
  %s2 = inlined_call_operand.vmem [shape: f32[1,64], index: 2, kind: input, shape index: {}]
  %s3 = inlined_call_operand.hbm [shape: bf16[64,128], index: 3, kind: input, shape index: {}]
  %s4 = inlined_call_operand.vmem [shape: f32[1,128], index: 4, kind: input, shape index: {}]
  %s5 = inlined_call_operand.hbm [shape: f32[8,128], index: 5, kind: output, shape index: {}]
  %s6 = sld [smem:[#allocation0]]
  $region42: #{tpu_custom_call.1} parent=0
    _
  %s8 = ssub.s32 1, %s6
  %s9 = scalar_select 0, %s8, %s6
  $region1: #{tpu_custom_call.1} parent=0
    #allocation2 [shape = 'u8[2048]{0}', space=vmem, size = 0x800, scoped, tag = 'input window, operand 0, single buffered']
    #allocation3 [shape = 's32[1]{0}', space=sflag, size = 0x4, scoped, tag = 'scoped memory for tpu_custom_call.1']
    #allocation4 [shape = 's32[1]{0}', space=sflag, size = 0x4, scoped, tag = 'scoped memory for tpu_custom_call.1']
    #allocation5 [shape = 'u8[8192]{0}', space=vmem, size = 0x2000, scoped, tag = 'input window, operand 1, single buffered']
    #allocation6 [shape = 's32[1]{0}', space=sflag, size = 0x4, scoped, tag = 'scoped memory for tpu_custom_call.1']
    #allocation7 [shape = 'u8[16384]{0}', space=vmem, size = 0x4000, scoped, tag = 'input window, operand 3, single buffered']
    #allocation8 [shape = 'u8[4096]{0}', space=vmem, size = 0x1000, scoped, tag = 'output window, operand 0, single buffered']
    %10 = vsyncpa [#allocation3], 0
    %11 = vsyncpa [#allocation6], 0
    %12 = vsyncpa [#allocation4], 0
    // Predicated region
    $region2: #{tpu_custom_call.1} parent=1 // pred_check
      _
    $region3: #{tpu_custom_call.1} parent=1 // pred_check_branch
      %14 = sbr.rel (0) target = $region5
    $region4: #{tpu_custom_call.1} parent=1 // pred_region
      %s16 = ssub.s32 64, 64
      %17 = vsyncadd [#allocation3], %s16
      %s19 = sshll.u32 [#allocation2], 4
      %s20 = int_to_ptr.vmem [resolvable:$true] %s19
      %22 = dma.hbm_to_vmem [thread:$0]  %s0, 64, %s20, [#allocation3]
    $region5: #{tpu_custom_call.1} parent=1 // pred_fallthru
      _
    // Predicated region
    $region6: #{tpu_custom_call.1} parent=1 // pred_check
      _
    $region7: #{tpu_custom_call.1} parent=1 // pred_check_branch
      %24 = sbr.rel (0) target = $region9
    $region8: #{tpu_custom_call.1} parent=1 // pred_region
      %s26 = ssub.s32 256, 256
      %27 = vsyncadd [#allocation6], %s26
      %s28 = sshll.u32 [#allocation5], 4
      %s29 = int_to_ptr.vmem [resolvable:$true] %s28
      %34 = dma.hbm_to_vmem [thread:$0]  %s1, 256, %s29, [#allocation6], 64, 64, 4
    $region9: #{tpu_custom_call.1} parent=1 // pred_fallthru
      _
    // Predicated region
    $region10: #{tpu_custom_call.1} parent=1 // pred_check
      _
    $region11: #{tpu_custom_call.1} parent=1 // pred_check_branch
      %36 = sbr.rel (0) target = $region13
    $region12: #{tpu_custom_call.1} parent=1 // pred_region
      _
    $region13: #{tpu_custom_call.1} parent=1 // pred_fallthru
      _
    // Predicated region
    $region14: #{tpu_custom_call.1} parent=1 // pred_check
      _
    $region15: #{tpu_custom_call.1} parent=1 // pred_check_branch
      %38 = sbr.rel (0) target = $region17
    $region16: #{tpu_custom_call.1} parent=1 // pred_region
      %s40 = ssub.s32 512, 512
      %41 = vsyncadd [#allocation6], %s40
      %s42 = sshll.u32 [#allocation7], 4
      %s43 = int_to_ptr.vmem [resolvable:$true] %s42
      %48 = dma.hbm_to_vmem [thread:$0]  %s3, 512, %s43, [#allocation6], 64, 64, 4
    $region17: #{tpu_custom_call.1} parent=1 // pred_fallthru
      _
    // Predicated region
    $region18: #{tpu_custom_call.1} parent=1 // pred_check
      _
    $region19: #{tpu_custom_call.1} parent=1 // pred_check_branch
      %50 = sbr.rel (0) target = $region21
    $region20: #{tpu_custom_call.1} parent=1 // pred_region
      _
    $region21: #{tpu_custom_call.1} parent=1 // pred_fallthru
      _
    // Predicated region
    $region22: #{tpu_custom_call.1} parent=1 // pred_check
      _
    $region23: #{tpu_custom_call.1} parent=1 // pred_check_branch
      %52 = sbr.rel (0) target = $region25
    $region24: #{tpu_custom_call.1} parent=1 // pred_region
      %53 = dma.done [#allocation3], 64
    $region25: #{tpu_custom_call.1} parent=1 // pred_fallthru
      _
    // Predicated region
    $region26: #{tpu_custom_call.1} parent=1 // pred_check
      _
    $region27: #{tpu_custom_call.1} parent=1 // pred_check_branch
      %55 = sbr.rel (0) target = $region29
    $region28: #{tpu_custom_call.1} parent=1 // pred_region
      %56 = dma.done [#allocation6], 256
    $region29: #{tpu_custom_call.1} parent=1 // pred_fallthru
      _
    // Predicated region
    $region30: #{tpu_custom_call.1} parent=1 // pred_check
      _
    $region31: #{tpu_custom_call.1} parent=1 // pred_check_branch
      %58 = sbr.rel (0) target = $region33
    $region32: #{tpu_custom_call.1} parent=1 // pred_region
      %59 = dma.done [#allocation6], 512
    $region33: #{tpu_custom_call.1} parent=1 // pred_fallthru
      _
    %v61 = vld [vmem:[#allocation2] sm:$0xf]
    %v62 = vld [vmem:[#allocation5] sm:$0xf]
    %v63 = vld [vmem:[#allocation5 + $0x4] sm:$0xf]
    %v64 = vld [vmem:[#allocation5 + $0x8] sm:$0xf]
    %v65 = vld [vmem:[#allocation5 + $0xc] sm:$0xf]
    %v66 = vld [vmem:[%s2] sm:$0x1]
    %v68 = vlaneseq
    %v69 = vshrl.u32 %v68, 7
    %v70 = vsub.s32 0, %v69
    %v71 = vrot.slane %v66, %v70
    %v77 = vunpack.c.l.b16 %v62
    %v78 = vunpack.c.l.b16 %v63
    %v79 = vunpack.c.l.b16 %v64
    %v80 = vunpack.c.l.b16 %v65
    %v81 = vpack.c.b16 %v78, %v77
    %v82 = vpack.c.b16 %v80, %v79
    %vm85 = vcmask 261120
    %v87 = vsel %vm85, %v61, 0
    %89 = vmatprep.subr.bf16.mxu0 0
    %90 = vmatpush1.bf16.msra.mxu0 %v81
    %91 = vmatprep.subr.bf16.mxu0 0
    %92 = vmatpush1.bf16.msra.mxu0 %v82
    %93 = vmatprep.subr.bf16.mxu0 0
    %94 = vmatpush1.bf16.msra.mxu0 0
    %95 = vmatprep.subr.bf16.mxu0 0
    %96 = vmatpush1.bf16.msra.mxu0 0
    %97 = vmatprep.subr.bf16.mxu0 0
    %98 = vmatpush1.bf16.msra.mxu0 0
    %99 = vmatprep.subr.bf16.mxu0 0
    %100 = vmatpush1.bf16.msra.mxu0 0
    %101 = vmatprep.subr.bf16.mxu0 0
    %102 = vmatpush1.bf16.msra.mxu0 0
    %103 = vmatprep.subr.bf16.mxu0 0
    %104 = vmatpush1.bf16.msra.mxu0 0
    %105 = vmatprep.subr.bf16.mxu0 0
    %106 = vmatpush1.bf16.msra.mxu0 0
    %107 = vmatprep.subr.bf16.mxu0 0
    %108 = vmatpush1.bf16.msra.mxu0 0
    %109 = vmatprep.subr.bf16.mxu0 0
    %110 = vmatpush1.bf16.msra.mxu0 0
    %111 = vmatprep.subr.bf16.mxu0 0
    %112 = vmatpush1.bf16.msra.mxu0 0
    %113 = vmatprep.subr.bf16.mxu0 0
    %114 = vmatpush1.bf16.msra.mxu0 0
    %115 = vmatprep.subr.bf16.mxu0 0
    %116 = vmatpush1.bf16.msra.mxu0 0
    %117 = vmatprep.subr.bf16.mxu0 0
    %118 = vmatpush1.bf16.msra.mxu0 0
    %119 = vmatprep.subr.bf16.mxu0 0
    %120 = vmatpush1.bf16.msra.mxu0 0
    %121 = vmatprep.mubr.bf16.mxu0 0
    %122 = vmatmul.mubr.bf16.gmra.mrb[0].mxu0 %v87
    %v123 = vpop.f32.mrb[0].mxu0
    %v124 = vadd.f32 %v71, %v123
    %v125 = vpop.f32.mrb[0].mxu0
    %v126 = vpop.f32.mrb[0].mxu0
    %v127 = vpop.f32.mrb[0].mxu0
    %128 = vdwg.mxu0
    %v129 = vpack.c.bf16 %v124, %v124
    %v130 = vld [vmem:[#allocation7] sm:$0xf]
    %v131 = vld [vmem:[#allocation7 + $0x4] sm:$0xf]
    %v132 = vld [vmem:[#allocation7 + $0x8] sm:$0xf]
    %v133 = vld [vmem:[#allocation7 + $0xc] sm:$0xf]
    %v134 = vld [vmem:[#allocation7 + $0x10] sm:$0xf]
    %v135 = vld [vmem:[#allocation7 + $0x14] sm:$0xf]
    %v136 = vld [vmem:[#allocation7 + $0x18] sm:$0xf]
    %v137 = vld [vmem:[#allocation7 + $0x1c] sm:$0xf]
    %v138 = vld [vmem:[%s4] sm:$0x1]
    %v140 = vlaneseq
    %v141 = vshrl.u32 %v140, 7
    %v142 = vsub.s32 0, %v141
    %v143 = vrot.slane %v138, %v142
    %v153 = vunpack.c.l.b16 %v130
    %v154 = vunpack.c.l.b16 %v131
    %v155 = vunpack.c.l.b16 %v132
    %v156 = vunpack.c.l.b16 %v133
    %v157 = vunpack.c.l.b16 %v134
    %v158 = vunpack.c.l.b16 %v135
    %v159 = vunpack.c.l.b16 %v136
    %v160 = vunpack.c.l.b16 %v137
    %v161 = vpack.c.b16 %v154, %v153
    %v162 = vpack.c.b16 %v156, %v155
    %v163 = vpack.c.b16 %v158, %v157
    %v164 = vpack.c.b16 %v160, %v159
    %vm169 = vcmask 523264
    %v171 = vsel %vm169, %v129, 0
    %173 = vmatprep.subr.bf16.mxu0 0
    %174 = vmatpush1.bf16.msra.mxu0 %v161
    %175 = vmatprep.subr.bf16.mxu0 0
    %176 = vmatpush1.bf16.msra.mxu0 %v162
    %177 = vmatprep.subr.bf16.mxu0 0
    %178 = vmatpush1.bf16.msra.mxu0 %v163
    %179 = vmatprep.subr.bf16.mxu0 0
    %180 = vmatpush1.bf16.msra.mxu0 %v164
    %181 = vmatprep.subr.bf16.mxu0 0
    %182 = vmatpush1.bf16.msra.mxu0 0
    %183 = vmatprep.subr.bf16.mxu0 0
    %184 = vmatpush1.bf16.msra.mxu0 0
    %185 = vmatprep.subr.bf16.mxu0 0
    %186 = vmatpush1.bf16.msra.mxu0 0
    %187 = vmatprep.subr.bf16.mxu0 0
    %188 = vmatpush1.bf16.msra.mxu0 0
    %189 = vmatprep.subr.bf16.mxu0 0
    %190 = vmatpush1.bf16.msra.mxu0 0
    %191 = vmatprep.subr.bf16.mxu0 0
    %192 = vmatpush1.bf16.msra.mxu0 0
    %193 = vmatprep.subr.bf16.mxu0 0
    %194 = vmatpush1.bf16.msra.mxu0 0
    %195 = vmatprep.subr.bf16.mxu0 0
    %196 = vmatpush1.bf16.msra.mxu0 0
    %197 = vmatprep.subr.bf16.mxu0 0
    %198 = vmatpush1.bf16.msra.mxu0 0
    %199 = vmatprep.subr.bf16.mxu0 0
    %200 = vmatpush1.bf16.msra.mxu0 0
    %201 = vmatprep.subr.bf16.mxu0 0
    %202 = vmatpush1.bf16.msra.mxu0 0
    %203 = vmatprep.subr.bf16.mxu0 0
    %204 = vmatpush1.bf16.msra.mxu0 0
    %205 = vmatprep.mubr.bf16.mxu0 0
    %206 = vmatmul.mubr.bf16.gmra.mrb[0].mxu0 %v171
    %v207 = vpop.f32.mrb[0].mxu0
    %v208 = vadd.f32 %v143, %v207
    %v209 = vpop.f32.mrb[0].mxu0
    %v210 = vpop.f32.mrb[0].mxu0
    %v211 = vpop.f32.mrb[0].mxu0
    %212 = vdwg.mxu0
    %v213 = vmax.f32 %v208, 0.0
    %v214 = vlaneseq
    %v215 = vand.u32 %v214, 127
    %vm216 = vcmp.lt.s32.totalorder %v215, 16
    %v217 = vsel %vm216, %v213, -inf
    %218 = vmax.xlane.f32.xlu0 %v217
    %v219 = vpop.xlane.xlu0 %218
    %v220 = vsub.f32 %v217, %v219
    %v221 = vmul.f32 %v220, 1.442695
    %v222 = vpow.pop %v221
    %223 = vadd.xlane.f32.xlu0 %v222
    %v224 = vpop.xlane.xlu0 %223
    %v225 = vlog2.pop %v224
    %v226 = vmul.f32 %v225, 0.6931472
    %v227 = vsub.f32 %v220, %v226
    %228 = vst [vmem:[#allocation8] sm:$0xff] %v227
    // Predicated region
    $region34: #{tpu_custom_call.1} parent=1 // pred_check
      _
    $region35: #{tpu_custom_call.1} parent=1 // pred_check_branch
      %230 = sbr.rel (0) target = $region37
    $region36: #{tpu_custom_call.1} parent=1 // pred_region
      %s232 = ssub.s32 128, 128
      %233 = vsyncadd [#allocation4], %s232
      %s235 = sshll.u32 [#allocation8], 4
      %s236 = int_to_ptr.vmem [resolvable:$true] %s235
      %238 = dma.vmem_to_hbm [thread:$0]  %s236, 128, %s5, [#allocation4]
    $region37: #{tpu_custom_call.1} parent=1 // pred_fallthru
      _
    // Predicated region
    $region38: #{tpu_custom_call.1} parent=1 // pred_check
      _
    $region39: #{tpu_custom_call.1} parent=1 // pred_check_branch
      %240 = sbr.rel (0) target = $region41
    $region40: #{tpu_custom_call.1} parent=1 // pred_region
      %241 = dma.done [#allocation4], 128
    $region41: #{tpu_custom_call.1} parent=1 // pred_fallthru
      _
    %242 = vsyncpa [#allocation3], 1
    %243 = vsyncpa [#allocation6], 1
    %244 = vsyncpa [#allocation4], 1

</llo_original>
